<compile_context>
chip_gen: v5e
topology: v5e:2x2
jax: 0.10.0
libtpu: 0.0.40
codegen_flags: <defaults>
</compile_context>

<pallas_src>
import jax
import jax.numpy as jnp
from jax import lax
from jax.experimental import pallas as pl
from jax.experimental.pallas import tpu as pltpu


# --------------------------------------------------------------------------
# Kernel: one grid step = T_CHUNK GRU timesteps over a (B, H) hidden state.
# --------------------------------------------------------------------------
def gru_chunk_kernel(x_ref,      # (T_CHUNK, B, H) pre-gathered embeddings
                     h0_ref,     # (B, H)   initial hidden (VMEM resident)
                     w_i_ref,    # (H, 3H)  packed input->gates weights (resident)
                     w_h_ref,    # (H, 3H)  packed hidden->gates weights (resident)
                     b_g_ref,    # (1, 3H)  [b_ir+b_hr | b_iz+b_hz | b_in]
                     b_hn_ref,   # (1, H)   hidden-side bias of the n gate
                     out_ref,    # (T_CHUNK, B, H) hidden state after each step
                     h_scr):     # VMEM scratch (B, H) f32: carried hidden state
    H = h_scr.shape[-1]
    c = pl.program_id(0)

    @pl.when(c == 0)
    def _():
        h_scr[...] = h0_ref[...].astype(jnp.float32)

    # Hoisted loads: weights/biases stay in vregs/VMEM across the inner loop.
    w_i = w_i_ref[...]
    w_h = w_h_ref[...]
    b_g = b_g_ref[...].astype(jnp.float32)
    b_hn = b_hn_ref[...].astype(jnp.float32)
    t_chunk = x_ref.shape[0]

    def step(i, carry):
        x = x_ref[i]                                    # (B, H), matmul dtype
        h = h_scr[...]                                  # (B, H), f32
        # Two fused MXU matmuls (instead of six per-gate ones), f32 accumulate.
        gi = jnp.dot(x, w_i, preferred_element_type=jnp.float32) + b_g
        gh = jnp.dot(h.astype(w_h.dtype), w_h, preferred_element_type=jnp.float32)
        r = jax.nn.sigmoid(gi[:, 0 * H:1 * H] + gh[:, 0 * H:1 * H])
        z = jax.nn.sigmoid(gi[:, 1 * H:2 * H] + gh[:, 1 * H:2 * H])
        n = jnp.tanh(gi[:, 2 * H:3 * H] + r * (gh[:, 2 * H:3 * H] + b_hn))
        h_new = (1.0 - z) * n + z * h
        h_scr[...] = h_new
        out_ref[i] = h_new.astype(out_ref.dtype)
        return carry

    # Unrolled so the LLO scheduler can overlap EUP (sigmoid/tanh) of step i
    # with the MXU push of step i+1's input-side matmul.
    lax.fori_loop(0, t_chunk, step, 0, unroll=True)


# --------------------------------------------------------------------------
# Wrappers
# --------------------------------------------------------------------------
def encoder_rnn_encode(packed, tokens, hidden0, *, t_chunk=8,
                       matmul_dtype=jnp.float32):
    """Run the GRU encoder over (seq_len, batch) token ids in ONE pallas_call.

    tokens:  (seq_len, batch) or (seq_len,) int32 token ids
    hidden0: (1, batch, H) (or anything reshapeable to (batch, H))
    returns (outputs (seq_len, batch, H) f32, hidden_final (1, batch, H) f32)
    """
    H = packed["hidden_size"]
    tokens = jnp.asarray(tokens, jnp.int32)
    if tokens.ndim == 1:
        tokens = tokens[:, None]
    S, B = tokens.shape

    t_chunk = max(1, min(int(t_chunk), S))
    n_chunks = pl.cdiv(S, t_chunk)
    s_pad = n_chunks * t_chunk

    # Bulk embedding gather OUTSIDE the kernel (perf review item 4, option 2):
    # one aligned gather instead of seq_len tiny row DMAs on the critical path.
    x_all = jnp.take(packed["embedding"], tokens, axis=0)        # (S, B, H)
    if s_pad != S:
        # Padded steps compute garbage rows that are sliced off below; the
        # final hidden is read from the last *valid* output row.
        x_all = jnp.pad(x_all, ((0, s_pad - S), (0, 0), (0, 0)))
    x_all = x_all.astype(matmul_dtype)

    h0 = jnp.asarray(hidden0, jnp.float32).reshape(B, H)
    w_i = packed["w_i"].astype(matmul_dtype)
    w_h = packed["w_h"].astype(matmul_dtype)

    const2 = lambda c: (0, 0)

    outputs = pl.pallas_call(
        gru_chunk_kernel,
        grid=(n_chunks,),
        in_specs=[
            pl.BlockSpec((t_chunk, B, H), lambda c: (c, 0, 0)),   # x chunk
            pl.BlockSpec((B, H), const2),                         # h0 (resident)
            pl.BlockSpec((H, 3 * H), const2),                     # w_i (resident)
            pl.BlockSpec((H, 3 * H), const2),                     # w_h (resident)
            pl.BlockSpec((1, 3 * H), const2),                     # fused biases
            pl.BlockSpec((1, H), const2),                         # b_hn
        ],
        out_specs=pl.BlockSpec((t_chunk, B, H), lambda c: (c, 0, 0)),
        out_shape=jax.ShapeDtypeStruct((s_pad, B, H), jnp.float32),
        scratch_shapes=[pltpu.VMEM((B, H), jnp.float32)],
        compiler_params=pltpu.CompilerParams(
            # Time recurrence -> must stay sequential.
            dimension_semantics=("arbitrary",),
            vmem_limit_bytes=32 * 1024 * 1024),
    )(x_all, h0, w_i, w_h, packed["b_g"], packed["b_hn"])

    outputs = outputs[:S]                       # drop padded timesteps
    hidden_final = outputs[S - 1].reshape(1, B, H)
    return outputs, hidden_final


def encoder_rnn_forward(packed, token, hidden):
    """Equivalent of EncoderRNN.forward(input, hidden) — a single GRU step.

    token:  scalar int32 token id
    hidden: (1, 1, H)
    returns (output (1, 1, H), hidden (1, 1, H))
    """
    H = packed["hidden_size"]
    tokens = jnp.reshape(jnp.asarray(token, jnp.int32), (1, 1))
    outputs, hidden_final = encoder_rnn_encode(packed, tokens, hidden, t_chunk=1)
    return outputs.reshape(1, 1, H), hidden_final.reshape(1, 1, H)


# --------------------------------------------------------------------------
# Parameters (PyTorch-style unpacked form + packed form used by the kernel)
# --------------------------------------------------------------------------
def init_params(key, input_size, hidden_size):
    ks = jax.random.split(key, 14)
    bound = 1.0 / float(hidden_size) ** 0.5
    u = lambda k, shape: jax.random.uniform(k, shape, jnp.float32, -bound, bound)
    params = {
        "hidden_size": hidden_size,
        # nn.Embedding default init ~ N(0, 1)
        "embedding": jax.random.normal(ks[0], (input_size, hidden_size), jnp.float32),
    }
    for i, name in enumerate(["w_ir", "w_iz", "w_in", "w_hr", "w_hz", "w_hn"]):
        params[name] = u(ks[1 + i], (hidden_size, hidden_size))
    for i, name in enumerate(["b_ir", "b_iz", "b_in", "b_hr", "b_hz", "b_hn"]):
        params[name] = u(ks[7 + i], (1, hidden_size))
    return params


def pack_params(params):
    """Fuse per-gate weights/biases into the packed layout the kernel uses."""
    w_i = jnp.concatenate([params["w_ir"], params["w_iz"], params["w_in"]], axis=1)
    w_h = jnp.concatenate([params["w_hr"], params["w_hz"], params["w_hn"]], axis=1)
    # r/z biases can be pre-summed; b_in stays as-is; b_hn must stay separate
    # (it sits inside the r * (.) term in the PyTorch GRU formulation).
    b_g = jnp.concatenate([params["b_ir"] + params["b_hr"],
                           params["b_iz"] + params["b_hz"],
                           params["b_in"]], axis=1)
    return {
        "hidden_size": params["hidden_size"],
        "embedding": params["embedding"],
        "w_i": w_i,              # (H, 3H)
        "w_h": w_h,              # (H, 3H)
        "b_g": b_g,              # (1, 3H)
        "b_hn": params["b_hn"],  # (1, H)
    }


# --------------------------------------------------------------------------
# Pure-JAX reference (uses the unpacked PyTorch-style parameters)
# --------------------------------------------------------------------------
def encoder_rnn_reference(params, tokens, hidden0):
    """tokens (S, B); hidden0 reshaped to (B, H). Returns ((S,B,H), (1,B,H))."""
    H = params["hidden_size"]
    S, B = tokens.shape
    h = jnp.asarray(hidden0, jnp.float32).reshape(B, H)
    outs = []
    for t in range(S):
        x = params["embedding"][tokens[t]]                     # (B, H)
        r = jax.nn.sigmoid(x @ params["w_ir"] + params["b_ir"]
                           + h @ params["w_hr"] + params["b_hr"])
        z = jax.nn.sigmoid(x @ params["w_iz"] + params["b_iz"]
                           + h @ params["w_hz"] + params["b_hz"])
        n = jnp.tanh(x @ params["w_in"] + params["b_in"]
                     + r * (h @ params["w_hn"] + params["b_hn"]))
        h = (1.0 - z) * n + z * h
        outs.append(h)
    return jnp.stack(outs, axis=0), h.reshape(1, B, H)


# --------------------------------------------------------------------------
# Demo / correctness check
# --------------------------------------------------------------------------
if __name__ == "__main__":
    vocab_size = 16
    hidden_size = 32   # NOTE: toy size. Production: H % 128 == 0 and B >= 8
                       # (ideally 128-256) so every vreg/lane/sublane is full.
    seq_len = 9        # deliberately not a multiple of t_chunk (tests padding)
    batch = 4          # B independent sequences share the weights
    t_chunk = 4        # timesteps per grid iteration

    key = jax.random.PRNGKey(0)
    pkey, tkey = jax.random.split(key)
    params = init_params(pkey, vocab_size, hidden_size)
    packed = pack_params(params)

    tokens = jax.random.randint(tkey, (seq_len, batch), 0, vocab_size, dtype=jnp.int32)
    hidden0 = jnp.zeros((1, batch, hidden_size), jnp.float32)   # init_hidden() x batch

    # --- batched, time-chunked encode: one pallas_call for the whole sequence ---
    outs, h_fin = encoder_rnn_encode(packed, tokens, hidden0, t_chunk=t_chunk)
    outs = jax.block_until_ready(outs)
    h_fin = jax.block_until_ready(h_fin)

    ref_outs, ref_h = encoder_rnn_reference(params, tokens, hidden0)
    assert outs.shape == (seq_len, batch, hidden_size)
    assert h_fin.shape == (1, batch, hidden_size)
    assert jnp.allclose(outs, ref_outs, atol=1e-4, rtol=1e-4)
    assert jnp.allclose(h_fin, ref_h, atol=1e-4, rtol=1e-4)

    # --- bf16 weights/activations on the MXU, f32 gate math (perf review) ---
    outs_bf16, _ = encoder_rnn_encode(packed, tokens, hidden0, t_chunk=t_chunk,
                                      matmul_dtype=jnp.bfloat16)
    outs_bf16 = jax.block_until_ready(outs_bf16)
    assert jnp.allclose(outs_bf16, ref_outs, atol=5e-2, rtol=5e-2)

    # --- single-step forward, matching EncoderRNN.forward(input, hidden) ---
    out1, hid1 = encoder_rnn_forward(packed, tokens[0, 0],
                                     jnp.zeros((1, 1, hidden_size), jnp.float32))
    out1 = jax.block_until_ready(out1)
    hid1 = jax.block_until_ready(hid1)
    ref1_out, ref1_h = encoder_rnn_reference(params, tokens[:1, :1],
                                             jnp.zeros((1, 1, hidden_size), jnp.float32))
    assert out1.shape == (1, 1, hidden_size) and hid1.shape == (1, 1, hidden_size)
    assert jnp.allclose(out1, ref1_out.reshape(1, 1, hidden_size), atol=1e-4, rtol=1e-4)
    assert jnp.allclose(hid1, ref1_h.reshape(1, 1, hidden_size), atol=1e-4, rtol=1e-4)

    print("KERNEL_OK")
</pallas_src>

<mosaic_0001>
module attributes {stable_mosaic.version = 11 : i64} {
  func.func @gru_chunk_kernel(%arg0: i32, %arg1: memref<4x4x32xf32, #tpu.memory_space<vmem>>, %arg2: memref<4x32xf32, #tpu.memory_space<vmem>>, %arg3: memref<32x96xf32, #tpu.memory_space<vmem>>, %arg4: memref<32x96xf32, #tpu.memory_space<vmem>>, %arg5: memref<1x96xf32, #tpu.memory_space<vmem>>, %arg6: memref<1x32xf32, #tpu.memory_space<vmem>>, %arg7: memref<4x4x32xf32, #tpu.memory_space<vmem>>, %arg8: memref<4x32xf32, #tpu.memory_space<vmem>>) attributes {dimension_semantics = [#tpu.dimension_semantics<arbitrary>], iteration_bounds = array<i64: 3>, scalar_prefetch = 0 : i64, scratch_operands = 1 : i64, tpu.core_type = #tpu.core_type<tc>, window_params = [{transform_indices = @transform_0, window_bounds = array<i64: 4, 4, 32>}, {pipeline_mode = #tpu.pipeline_mode<synchronous>, transform_indices = @transform_1, window_bounds = array<i64: 4, 32>}, {pipeline_mode = #tpu.pipeline_mode<synchronous>, transform_indices = @transform_2, window_bounds = array<i64: 32, 96>}, {pipeline_mode = #tpu.pipeline_mode<synchronous>, transform_indices = @transform_3, window_bounds = array<i64: 32, 96>}, {pipeline_mode = #tpu.pipeline_mode<synchronous>, transform_indices = @transform_4, window_bounds = array<i64: 1, 96>}, {pipeline_mode = #tpu.pipeline_mode<synchronous>, transform_indices = @transform_5, window_bounds = array<i64: 1, 32>}, {transform_indices = @transform_6, window_bounds = array<i64: 4, 4, 32>}]} {
    %c0_i32 = arith.constant 0 : i32
    %0 = arith.cmpi eq, %arg0, %c0_i32 : i32
    %1 = arith.extui %0 : i1 to i32
    %c0_i32_0 = arith.constant 0 : i32
    %2 = arith.cmpi ne, %1, %c0_i32_0 : i32
    scf.if %2 {
      %c0_60 = arith.constant 0 : index
      %c0_61 = arith.constant 0 : index
      %171 = vector.load %arg2[%c0_60, %c0_61] : memref<4x32xf32, #tpu.memory_space<vmem>>, vector<4x32xf32>
      %c0_62 = arith.constant 0 : index
      %c0_63 = arith.constant 0 : index
      %172 = vector.load %arg8[%c0_62, %c0_63] : memref<4x32xf32, #tpu.memory_space<vmem>>, vector<4x32xf32>
      tpu.vector_store %arg8[%c0_62, %c0_63], %171 {strides = array<i32>} : memref<4x32xf32, #tpu.memory_space<vmem>>, vector<4x32xf32>,
    } else {
    }
    %c0 = arith.constant 0 : index
    %c0_1 = arith.constant 0 : index
    %3 = vector.load %arg3[%c0, %c0_1] : memref<32x96xf32, #tpu.memory_space<vmem>>, vector<32x96xf32>
    %c0_2 = arith.constant 0 : index
    %c0_3 = arith.constant 0 : index
    %4 = vector.load %arg4[%c0_2, %c0_3] : memref<32x96xf32, #tpu.memory_space<vmem>>, vector<32x96xf32>
    %c0_4 = arith.constant 0 : index
    %c0_5 = arith.constant 0 : index
    %5 = vector.load %arg5[%c0_4, %c0_5] : memref<1x96xf32, #tpu.memory_space<vmem>>, vector<1x96xf32>
    %c0_6 = arith.constant 0 : index
    %c0_7 = arith.constant 0 : index
    %6 = vector.load %arg6[%c0_6, %c0_7] : memref<1x32xf32, #tpu.memory_space<vmem>>, vector<1x32xf32>
    %c0_i32_8 = arith.constant 0 : i32
    %7 = arith.index_cast %c0_i32_8 : i32 to index
    %c0_9 = arith.constant 0 : index
    %c0_10 = arith.constant 0 : index
    %8 = vector.load %arg1[%7, %c0_9, %c0_10] : memref<4x4x32xf32, #tpu.memory_space<vmem>>, vector<1x4x32xf32>
    %9 = vector.shape_cast %8 : vector<1x4x32xf32> to vector<4x32xf32>
    %c0_11 = arith.constant 0 : index
    %c0_12 = arith.constant 0 : index
    %10 = vector.load %arg8[%c0_11, %c0_12] : memref<4x32xf32, #tpu.memory_space<vmem>>, vector<4x32xf32>
    %cst = arith.constant dense<0.000000e+00> : vector<4x96xf32>
    %11 = tpu.matmul %9, %3, %cst {dimension_numbers = #tpu.dot_dimension_numbers<[1], [0], [0], [1], [0, 0, 1, 1], [], []>} : vector<4x32xf32>, vector<32x96xf32>, vector<4x96xf32> -> vector<4x96xf32>
    %12 = vector.broadcast %5 : vector<1x96xf32> to vector<4x96xf32>
    %13 = arith.addf %11, %12 : vector<4x96xf32>
    %cst_13 = arith.constant dense<0.000000e+00> : vector<4x96xf32>
    %14 = tpu.matmul %10, %4, %cst_13 {dimension_numbers = #tpu.dot_dimension_numbers<[1], [0], [0], [1], [0, 0, 1, 1], [], []>} : vector<4x32xf32>, vector<32x96xf32>, vector<4x96xf32> -> vector<4x96xf32>
    %15 = vector.extract_strided_slice %13 {offsets = [0, 0], sizes = [4, 32], strides = [1, 1]} : vector<4x96xf32> to vector<4x32xf32>
    %16 = vector.extract_strided_slice %14 {offsets = [0, 0], sizes = [4, 32], strides = [1, 1]} : vector<4x96xf32> to vector<4x32xf32>
    %17 = arith.addf %15, %16 : vector<4x32xf32>
    %18 = arith.negf %17 : vector<4x32xf32>
    %19 = math.exp %18 : vector<4x32xf32>
    %cst_14 = arith.constant 1.000000e+00 : f32
    %20 = vector.broadcast %cst_14 : f32 to vector<4x32xf32>
    %21 = arith.addf %20, %19 : vector<4x32xf32>
    %22 = arith.divf %20, %21 : vector<4x32xf32>
    %23 = vector.extract_strided_slice %13 {offsets = [0, 32], sizes = [4, 32], strides = [1, 1]} : vector<4x96xf32> to vector<4x32xf32>
    %24 = vector.extract_strided_slice %14 {offsets = [0, 32], sizes = [4, 32], strides = [1, 1]} : vector<4x96xf32> to vector<4x32xf32>
    %25 = arith.addf %23, %24 : vector<4x32xf32>
    %26 = arith.negf %25 : vector<4x32xf32>
    %27 = math.exp %26 : vector<4x32xf32>
    %cst_15 = arith.constant 1.000000e+00 : f32
    %28 = vector.broadcast %cst_15 : f32 to vector<4x32xf32>
    %29 = arith.addf %28, %27 : vector<4x32xf32>
    %30 = arith.divf %28, %29 : vector<4x32xf32>
    %31 = vector.extract_strided_slice %13 {offsets = [0, 64], sizes = [4, 32], strides = [1, 1]} : vector<4x96xf32> to vector<4x32xf32>
    %32 = vector.extract_strided_slice %14 {offsets = [0, 64], sizes = [4, 32], strides = [1, 1]} : vector<4x96xf32> to vector<4x32xf32>
    %33 = vector.broadcast %6 : vector<1x32xf32> to vector<4x32xf32>
    %34 = arith.addf %32, %33 : vector<4x32xf32>
    %35 = arith.mulf %22, %34 : vector<4x32xf32>
    %36 = arith.addf %31, %35 : vector<4x32xf32>
    %37 = math.tanh %36 : vector<4x32xf32>
    %cst_16 = arith.constant 1.000000e+00 : f32
    %38 = vector.broadcast %cst_16 : f32 to vector<4x32xf32>
    %39 = arith.subf %38, %30 : vector<4x32xf32>
    %40 = arith.mulf %39, %37 : vector<4x32xf32>
    %41 = arith.mulf %30, %10 : vector<4x32xf32>
    %42 = arith.addf %40, %41 : vector<4x32xf32>
    %c0_17 = arith.constant 0 : index
    %c0_18 = arith.constant 0 : index
    %43 = vector.load %arg8[%c0_17, %c0_18] : memref<4x32xf32, #tpu.memory_space<vmem>>, vector<4x32xf32>
    tpu.vector_store %arg8[%c0_17, %c0_18], %42 {strides = array<i32>} : memref<4x32xf32, #tpu.memory_space<vmem>>, vector<4x32xf32>,
    %44 = arith.index_cast %c0_i32_8 : i32 to index
    %c0_19 = arith.constant 0 : index
    %c0_20 = arith.constant 0 : index
    %45 = vector.load %arg7[%44, %c0_19, %c0_20] : memref<4x4x32xf32, #tpu.memory_space<vmem>>, vector<1x4x32xf32>
    %46 = vector.shape_cast %45 : vector<1x4x32xf32> to vector<4x32xf32>
    %47 = vector.shape_cast %42 : vector<4x32xf32> to vector<1x4x32xf32>
    tpu.vector_store %arg7[%44, %c0_19, %c0_20], %47 {strides = array<i32>} : memref<4x4x32xf32, #tpu.memory_space<vmem>>, vector<1x4x32xf32>,
    %c1_i32 = arith.constant 1 : i32
    %48 = arith.index_cast %c1_i32 : i32 to index
    %c0_21 = arith.constant 0 : index
    %c0_22 = arith.constant 0 : index
    %49 = vector.load %arg1[%48, %c0_21, %c0_22] : memref<4x4x32xf32, #tpu.memory_space<vmem>>, vector<1x4x32xf32>
    %50 = vector.shape_cast %49 : vector<1x4x32xf32> to vector<4x32xf32>
    %c0_23 = arith.constant 0 : index
    %c0_24 = arith.constant 0 : index
    %51 = vector.load %arg8[%c0_23, %c0_24] : memref<4x32xf32, #tpu.memory_space<vmem>>, vector<4x32xf32>
    %cst_25 = arith.constant dense<0.000000e+00> : vector<4x96xf32>
    %52 = tpu.matmul %50, %3, %cst_25 {dimension_numbers = #tpu.dot_dimension_numbers<[1], [0], [0], [1], [0, 0, 1, 1], [], []>} : vector<4x32xf32>, vector<32x96xf32>, vector<4x96xf32> -> vector<4x96xf32>
    %53 = vector.broadcast %5 : vector<1x96xf32> to vector<4x96xf32>
    %54 = arith.addf %52, %53 : vector<4x96xf32>
    %cst_26 = arith.constant dense<0.000000e+00> : vector<4x96xf32>
    %55 = tpu.matmul %51, %4, %cst_26 {dimension_numbers = #tpu.dot_dimension_numbers<[1], [0], [0], [1], [0, 0, 1, 1], [], []>} : vector<4x32xf32>, vector<32x96xf32>, vector<4x96xf32> -> vector<4x96xf32>
    %56 = vector.extract_strided_slice %54 {offsets = [0, 0], sizes = [4, 32], strides = [1, 1]} : vector<4x96xf32> to vector<4x32xf32>
    %57 = vector.extract_strided_slice %55 {offsets = [0, 0], sizes = [4, 32], strides = [1, 1]} : vector<4x96xf32> to vector<4x32xf32>
    %58 = arith.addf %56, %57 : vector<4x32xf32>
    %59 = arith.negf %58 : vector<4x32xf32>
    %60 = math.exp %59 : vector<4x32xf32>
    %cst_27 = arith.constant 1.000000e+00 : f32
    %61 = vector.broadcast %cst_27 : f32 to vector<4x32xf32>
    %62 = arith.addf %61, %60 : vector<4x32xf32>
    %63 = arith.divf %61, %62 : vector<4x32xf32>
    %64 = vector.extract_strided_slice %54 {offsets = [0, 32], sizes = [4, 32], strides = [1, 1]} : vector<4x96xf32> to vector<4x32xf32>
    %65 = vector.extract_strided_slice %55 {offsets = [0, 32], sizes = [4, 32], strides = [1, 1]} : vector<4x96xf32> to vector<4x32xf32>
    %66 = arith.addf %64, %65 : vector<4x32xf32>
    %67 = arith.negf %66 : vector<4x32xf32>
    %68 = math.exp %67 : vector<4x32xf32>
    %cst_28 = arith.constant 1.000000e+00 : f32
    %69 = vector.broadcast %cst_28 : f32 to vector<4x32xf32>
    %70 = arith.addf %69, %68 : vector<4x32xf32>
    %71 = arith.divf %69, %70 : vector<4x32xf32>
    %72 = vector.extract_strided_slice %54 {offsets = [0, 64], sizes = [4, 32], strides = [1, 1]} : vector<4x96xf32> to vector<4x32xf32>
    %73 = vector.extract_strided_slice %55 {offsets = [0, 64], sizes = [4, 32], strides = [1, 1]} : vector<4x96xf32> to vector<4x32xf32>
    %74 = vector.broadcast %6 : vector<1x32xf32> to vector<4x32xf32>
    %75 = arith.addf %73, %74 : vector<4x32xf32>
    %76 = arith.mulf %63, %75 : vector<4x32xf32>
    %77 = arith.addf %72, %76 : vector<4x32xf32>
    %78 = math.tanh %77 : vector<4x32xf32>
    %cst_29 = arith.constant 1.000000e+00 : f32
    %79 = vector.broadcast %cst_29 : f32 to vector<4x32xf32>
    %80 = arith.subf %79, %71 : vector<4x32xf32>
    %81 = arith.mulf %80, %78 : vector<4x32xf32>
    %82 = arith.mulf %71, %51 : vector<4x32xf32>
    %83 = arith.addf %81, %82 : vector<4x32xf32>
    %c0_30 = arith.constant 0 : index
    %c0_31 = arith.constant 0 : index
    %84 = vector.load %arg8[%c0_30, %c0_31] : memref<4x32xf32, #tpu.memory_space<vmem>>, vector<4x32xf32>
    tpu.vector_store %arg8[%c0_30, %c0_31], %83 {strides = array<i32>} : memref<4x32xf32, #tpu.memory_space<vmem>>, vector<4x32xf32>,
    %85 = arith.index_cast %c1_i32 : i32 to index
    %c0_32 = arith.constant 0 : index
    %c0_33 = arith.constant 0 : index
    %86 = vector.load %arg7[%85, %c0_32, %c0_33] : memref<4x4x32xf32, #tpu.memory_space<vmem>>, vector<1x4x32xf32>
    %87 = vector.shape_cast %86 : vector<1x4x32xf32> to vector<4x32xf32>
    %88 = vector.shape_cast %83 : vector<4x32xf32> to vector<1x4x32xf32>
    tpu.vector_store %arg7[%85, %c0_32, %c0_33], %88 {strides = array<i32>} : memref<4x4x32xf32, #tpu.memory_space<vmem>>, vector<1x4x32xf32>,
    %c2_i32 = arith.constant 2 : i32
    %89 = arith.index_cast %c2_i32 : i32 to index
    %c0_34 = arith.constant 0 : index
    %c0_35 = arith.constant 0 : index
    %90 = vector.load %arg1[%89, %c0_34, %c0_35] : memref<4x4x32xf32, #tpu.memory_space<vmem>>, vector<1x4x32xf32>
    %91 = vector.shape_cast %90 : vector<1x4x32xf32> to vector<4x32xf32>
    %c0_36 = arith.constant 0 : index
    %c0_37 = arith.constant 0 : index
    %92 = vector.load %arg8[%c0_36, %c0_37] : memref<4x32xf32, #tpu.memory_space<vmem>>, vector<4x32xf32>
    %cst_38 = arith.constant dense<0.000000e+00> : vector<4x96xf32>
    %93 = tpu.matmul %91, %3, %cst_38 {dimension_numbers = #tpu.dot_dimension_numbers<[1], [0], [0], [1], [0, 0, 1, 1], [], []>} : vector<4x32xf32>, vector<32x96xf32>, vector<4x96xf32> -> vector<4x96xf32>
    %94 = vector.broadcast %5 : vector<1x96xf32> to vector<4x96xf32>
    %95 = arith.addf %93, %94 : vector<4x96xf32>
    %cst_39 = arith.constant dense<0.000000e+00> : vector<4x96xf32>
    %96 = tpu.matmul %92, %4, %cst_39 {dimension_numbers = #tpu.dot_dimension_numbers<[1], [0], [0], [1], [0, 0, 1, 1], [], []>} : vector<4x32xf32>, vector<32x96xf32>, vector<4x96xf32> -> vector<4x96xf32>
    %97 = vector.extract_strided_slice %95 {offsets = [0, 0], sizes = [4, 32], strides = [1, 1]} : vector<4x96xf32> to vector<4x32xf32>
    %98 = vector.extract_strided_slice %96 {offsets = [0, 0], sizes = [4, 32], strides = [1, 1]} : vector<4x96xf32> to vector<4x32xf32>
    %99 = arith.addf %97, %98 : vector<4x32xf32>
    %100 = arith.negf %99 : vector<4x32xf32>
    %101 = math.exp %100 : vector<4x32xf32>
    %cst_40 = arith.constant 1.000000e+00 : f32
    %102 = vector.broadcast %cst_40 : f32 to vector<4x32xf32>
    %103 = arith.addf %102, %101 : vector<4x32xf32>
    %104 = arith.divf %102, %103 : vector<4x32xf32>
    %105 = vector.extract_strided_slice %95 {offsets = [0, 32], sizes = [4, 32], strides = [1, 1]} : vector<4x96xf32> to vector<4x32xf32>
    %106 = vector.extract_strided_slice %96 {offsets = [0, 32], sizes = [4, 32], strides = [1, 1]} : vector<4x96xf32> to vector<4x32xf32>
    %107 = arith.addf %105, %106 : vector<4x32xf32>
    %108 = arith.negf %107 : vector<4x32xf32>
    %109 = math.exp %108 : vector<4x32xf32>
    %cst_41 = arith.constant 1.000000e+00 : f32
    %110 = vector.broadcast %cst_41 : f32 to vector<4x32xf32>
    %111 = arith.addf %110, %109 : vector<4x32xf32>
    %112 = arith.divf %110, %111 : vector<4x32xf32>
    %113 = vector.extract_strided_slice %95 {offsets = [0, 64], sizes = [4, 32], strides = [1, 1]} : vector<4x96xf32> to vector<4x32xf32>
    %114 = vector.extract_strided_slice %96 {offsets = [0, 64], sizes = [4, 32], strides = [1, 1]} : vector<4x96xf32> to vector<4x32xf32>
    %115 = vector.broadcast %6 : vector<1x32xf32> to vector<4x32xf32>
    %116 = arith.addf %114, %115 : vector<4x32xf32>
    %117 = arith.mulf %104, %116 : vector<4x32xf32>
    %118 = arith.addf %113, %117 : vector<4x32xf32>
    %119 = math.tanh %118 : vector<4x32xf32>
    %cst_42 = arith.constant 1.000000e+00 : f32
    %120 = vector.broadcast %cst_42 : f32 to vector<4x32xf32>
    %121 = arith.subf %120, %112 : vector<4x32xf32>
    %122 = arith.mulf %121, %119 : vector<4x32xf32>
    %123 = arith.mulf %112, %92 : vector<4x32xf32>
    %124 = arith.addf %122, %123 : vector<4x32xf32>
    %c0_43 = arith.constant 0 : index
    %c0_44 = arith.constant 0 : index
    %125 = vector.load %arg8[%c0_43, %c0_44] : memref<4x32xf32, #tpu.memory_space<vmem>>, vector<4x32xf32>
    tpu.vector_store %arg8[%c0_43, %c0_44], %124 {strides = array<i32>} : memref<4x32xf32, #tpu.memory_space<vmem>>, vector<4x32xf32>,
    %126 = arith.index_cast %c2_i32 : i32 to index
    %c0_45 = arith.constant 0 : index
    %c0_46 = arith.constant 0 : index
    %127 = vector.load %arg7[%126, %c0_45, %c0_46] : memref<4x4x32xf32, #tpu.memory_space<vmem>>, vector<1x4x32xf32>
    %128 = vector.shape_cast %127 : vector<1x4x32xf32> to vector<4x32xf32>
    %129 = vector.shape_cast %124 : vector<4x32xf32> to vector<1x4x32xf32>
    tpu.vector_store %arg7[%126, %c0_45, %c0_46], %129 {strides = array<i32>} : memref<4x4x32xf32, #tpu.memory_space<vmem>>, vector<1x4x32xf32>,
    %c3_i32 = arith.constant 3 : i32
    %130 = arith.index_cast %c3_i32 : i32 to index
    %c0_47 = arith.constant 0 : index
    %c0_48 = arith.constant 0 : index
    %131 = vector.load %arg1[%130, %c0_47, %c0_48] : memref<4x4x32xf32, #tpu.memory_space<vmem>>, vector<1x4x32xf32>
    %132 = vector.shape_cast %131 : vector<1x4x32xf32> to vector<4x32xf32>
    %c0_49 = arith.constant 0 : index
    %c0_50 = arith.constant 0 : index
    %133 = vector.load %arg8[%c0_49, %c0_50] : memref<4x32xf32, #tpu.memory_space<vmem>>, vector<4x32xf32>
    %cst_51 = arith.constant dense<0.000000e+00> : vector<4x96xf32>
    %134 = tpu.matmul %132, %3, %cst_51 {dimension_numbers = #tpu.dot_dimension_numbers<[1], [0], [0], [1], [0, 0, 1, 1], [], []>} : vector<4x32xf32>, vector<32x96xf32>, vector<4x96xf32> -> vector<4x96xf32>
    %135 = vector.broadcast %5 : vector<1x96xf32> to vector<4x96xf32>
    %136 = arith.addf %134, %135 : vector<4x96xf32>
    %cst_52 = arith.constant dense<0.000000e+00> : vector<4x96xf32>
    %137 = tpu.matmul %133, %4, %cst_52 {dimension_numbers = #tpu.dot_dimension_numbers<[1], [0], [0], [1], [0, 0, 1, 1], [], []>} : vector<4x32xf32>, vector<32x96xf32>, vector<4x96xf32> -> vector<4x96xf32>
    %138 = vector.extract_strided_slice %136 {offsets = [0, 0], sizes = [4, 32], strides = [1, 1]} : vector<4x96xf32> to vector<4x32xf32>
    %139 = vector.extract_strided_slice %137 {offsets = [0, 0], sizes = [4, 32], strides = [1, 1]} : vector<4x96xf32> to vector<4x32xf32>
    %140 = arith.addf %138, %139 : vector<4x32xf32>
    %141 = arith.negf %140 : vector<4x32xf32>
    %142 = math.exp %141 : vector<4x32xf32>
    %cst_53 = arith.constant 1.000000e+00 : f32
    %143 = vector.broadcast %cst_53 : f32 to vector<4x32xf32>
    %144 = arith.addf %143, %142 : vector<4x32xf32>
    %145 = arith.divf %143, %144 : vector<4x32xf32>
    %146 = vector.extract_strided_slice %136 {offsets = [0, 32], sizes = [4, 32], strides = [1, 1]} : vector<4x96xf32> to vector<4x32xf32>
    %147 = vector.extract_strided_slice %137 {offsets = [0, 32], sizes = [4, 32], strides = [1, 1]} : vector<4x96xf32> to vector<4x32xf32>
    %148 = arith.addf %146, %147 : vector<4x32xf32>
    %149 = arith.negf %148 : vector<4x32xf32>
    %150 = math.exp %149 : vector<4x32xf32>
    %cst_54 = arith.constant 1.000000e+00 : f32
    %151 = vector.broadcast %cst_54 : f32 to vector<4x32xf32>
    %152 = arith.addf %151, %150 : vector<4x32xf32>
    %153 = arith.divf %151, %152 : vector<4x32xf32>
    %154 = vector.extract_strided_slice %136 {offsets = [0, 64], sizes = [4, 32], strides = [1, 1]} : vector<4x96xf32> to vector<4x32xf32>
    %155 = vector.extract_strided_slice %137 {offsets = [0, 64], sizes = [4, 32], strides = [1, 1]} : vector<4x96xf32> to vector<4x32xf32>
    %156 = vector.broadcast %6 : vector<1x32xf32> to vector<4x32xf32>
    %157 = arith.addf %155, %156 : vector<4x32xf32>
    %158 = arith.mulf %145, %157 : vector<4x32xf32>
    %159 = arith.addf %154, %158 : vector<4x32xf32>
    %160 = math.tanh %159 : vector<4x32xf32>
    %cst_55 = arith.constant 1.000000e+00 : f32
    %161 = vector.broadcast %cst_55 : f32 to vector<4x32xf32>
    %162 = arith.subf %161, %153 : vector<4x32xf32>
    %163 = arith.mulf %162, %160 : vector<4x32xf32>
    %164 = arith.mulf %153, %133 : vector<4x32xf32>
    %165 = arith.addf %163, %164 : vector<4x32xf32>
    %c0_56 = arith.constant 0 : index
    %c0_57 = arith.constant 0 : index
    %166 = vector.load %arg8[%c0_56, %c0_57] : memref<4x32xf32, #tpu.memory_space<vmem>>, vector<4x32xf32>
    tpu.vector_store %arg8[%c0_56, %c0_57], %165 {strides = array<i32>} : memref<4x32xf32, #tpu.memory_space<vmem>>, vector<4x32xf32>,
    %167 = arith.index_cast %c3_i32 : i32 to index
    %c0_58 = arith.constant 0 : index
    %c0_59 = arith.constant 0 : index
    %168 = vector.load %arg7[%167, %c0_58, %c0_59] : memref<4x4x32xf32, #tpu.memory_space<vmem>>, vector<1x4x32xf32>
    %169 = vector.shape_cast %168 : vector<1x4x32xf32> to vector<4x32xf32>
    %170 = vector.shape_cast %165 : vector<4x32xf32> to vector<1x4x32xf32>
    tpu.vector_store %arg7[%167, %c0_58, %c0_59], %170 {strides = array<i32>} : memref<4x4x32xf32, #tpu.memory_space<vmem>>, vector<1x4x32xf32>,
    %c4_i32 = arith.constant 4 : i32
    return
  }
  func.func @transform_0(%arg0: i32) -> (i32, i32, i32) {
    %c0_i32 = arith.constant 0 : i32
    %c0_i32_0 = arith.constant 0 : i32
    %c0_i32_1 = arith.constant 0 : i32
    return %arg0, %c0_i32, %c0_i32_0 : i32, i32, i32
  }
  func.func @transform_1(%arg0: i32) -> (i32, i32) {
    %c0_i32 = arith.constant 0 : i32
    %c0_i32_0 = arith.constant 0 : i32
    %c0_i32_1 = arith.constant 0 : i32
    return %c0_i32, %c0_i32_0 : i32, i32
  }
  func.func @transform_2(%arg0: i32) -> (i32, i32) {
    %c0_i32 = arith.constant 0 : i32
    %c0_i32_0 = arith.constant 0 : i32
    %c0_i32_1 = arith.constant 0 : i32
    return %c0_i32, %c0_i32_0 : i32, i32
  }
  func.func @transform_3(%arg0: i32) -> (i32, i32) {
    %c0_i32 = arith.constant 0 : i32
    %c0_i32_0 = arith.constant 0 : i32
    %c0_i32_1 = arith.constant 0 : i32
    return %c0_i32, %c0_i32_0 : i32, i32
  }
  func.func @transform_4(%arg0: i32) -> (i32, i32) {
    %c0_i32 = arith.constant 0 : i32
    %c0_i32_0 = arith.constant 0 : i32
    %c0_i32_1 = arith.constant 0 : i32
    return %c0_i32, %c0_i32_0 : i32, i32
  }
  func.func @transform_5(%arg0: i32) -> (i32, i32) {
    %c0_i32 = arith.constant 0 : i32
    %c0_i32_0 = arith.constant 0 : i32
    %c0_i32_1 = arith.constant 0 : i32
    return %c0_i32, %c0_i32_0 : i32, i32
  }
  func.func @transform_6(%arg0: i32) -> (i32, i32, i32) {
    %c0_i32 = arith.constant 0 : i32
    %c0_i32_0 = arith.constant 0 : i32
    %c0_i32_1 = arith.constant 0 : i32
    return %arg0, %c0_i32, %c0_i32_0 : i32, i32, i32
  }
}

</mosaic_0001>

<llo_original>
// kernel: tpu_custom_call.1
$region0: #{tpu_custom_call.1}
  #allocation0 [shape = 'u32[]', space=smem, size = 0x4, offset = 0x4, fixed_abs, tag = 'smem constant byte address 0x4 - core index']
  #allocation1 [shape = 'u32[72,128]{1,0:T(1,128)}', space=vmem, size = 0x9000, scoped, tag = 'internal scratch']
  #allocation2 [shape = 'f32[4,32]{1,0:T(4,128)}', space=vmem, size = 0x800, scoped, tag = 'scratch operand']
  %s0 = inlined_call_operand.hbm [shape: f32[12,4,32], index: 0, kind: input, shape index: {}]
  %s1 = inlined_call_operand.hbm [shape: f32[4,32], index: 1, kind: input, shape index: {}]
  %s2 = inlined_call_operand.hbm [shape: f32[32,96], index: 2, kind: input, shape index: {}]
  %s3 = inlined_call_operand.hbm [shape: f32[32,96], index: 3, kind: input, shape index: {}]
  %s4 = inlined_call_operand.vmem [shape: f32[1,96], index: 4, kind: input, shape index: {}]
  %s5 = inlined_call_operand.vmem [shape: f32[1,32], index: 5, kind: input, shape index: {}]
  %s6 = inlined_call_operand.hbm [shape: f32[12,4,32], index: 6, kind: output, shape index: {}]
  %s7 = sld [smem:[#allocation0]]
  $region77: #{tpu_custom_call.1} parent=0
    _
  %s9 = ssub.s32 1, %s7
  %s10 = scalar_select 0, %s9, %s7
  $region1: #{tpu_custom_call.1} parent=0
    #allocation3 [shape = 'u8[16384]{0}', space=vmem, size = 0x4000, scoped, tag = 'input window, operand 0']
    #allocation4 [shape = 's32[2]{0}', space=sflag, size = 0x8, scoped, tag = 'scoped memory for tpu_custom_call.1']
    #allocation5 [shape = 's32[2]{0}', space=sflag, size = 0x8, scoped, tag = 'scoped memory for tpu_custom_call.1']
    #allocation6 [shape = 'u8[2048]{0}', space=vmem, size = 0x800, scoped, tag = 'input window, operand 1, single buffered']
    #allocation7 [shape = 's32[1]{0}', space=sflag, size = 0x4, scoped, tag = 'scoped memory for tpu_custom_call.1']
    #allocation8 [shape = 'u8[16384]{0}', space=vmem, size = 0x4000, scoped, tag = 'input window, operand 2, single buffered']
    #allocation9 [shape = 'u8[16384]{0}', space=vmem, size = 0x4000, scoped, tag = 'input window, operand 3, single buffered']
    #allocation10 [shape = 's32[1]{0}', space=sflag, size = 0x4, scoped, tag = 'scoped memory for tpu_custom_call.1']
    #allocation11 [shape = 'u8[16384]{0}', space=vmem, size = 0x4000, scoped, tag = 'output window, operand 0']
    %11 = vsyncpa [#allocation4], 0
    %s12 = scalar_lea.sflag [#allocation4], 1
    %13 = vsyncpa %s12, 0
    %14 = vsyncpa [#allocation7], 0
    %15 = vsyncpa [#allocation10], 0
    %16 = vsyncpa [#allocation5], 0
    %s17 = scalar_lea.sflag [#allocation5], 1
    %18 = vsyncpa %s17, 0
    loop: start=0, step=1, limit=5
    $region2: #{tpu_custom_call.1} parent=1 // loop_pre_header
      _
    $region3: #{tpu_custom_call.1} parent=1 // loop_header
      %s20 = sphi 0, %s24
      %p21 = scmp.ge.s32.totalorder %s20, 5
      %s30 = sphi 0, %s32
      %s33 = sphi 0, %s30
      %s34 = sphi 0, %s33
      %s50 = sphi 0, %s34
      %s54 = sphi 0, %s54
      %s56 = sphi 0, %s54
      %s57 = sphi 0, %s56
      %s71 = sphi 0, %s57
      %s75 = sphi 0, %s75
      %s77 = sphi 0, %s75
      %s78 = sphi 0, %s77
      %s92 = sphi 0, %s78
      %s96 = sphi 0, %s96
      %s98 = sphi 0, %s96
      %s99 = sphi 0, %s98
      %s113 = sphi 0, %s99
      %s117 = sphi 0, %s117
      %s119 = sphi 0, %s117
      %s120 = sphi 0, %s119
      %s134 = sphi 0, %s120
      %s138 = sphi 0, %s138
      %s140 = sphi 0, %s138
      %s141 = sphi 0, %s140
      %s155 = sphi 0, %s141
      %s161 = sphi 0, %s163
      %s164 = sphi 0, %s161
      %s165 = sphi 0, %s164
      %s181 = sphi 0, %s165
    $region4: #{tpu_custom_call.1} parent=1 // loop_header_branch
      %23 = sbr.rel (%p21) target = $region8
    $region5: #{tpu_custom_call.1} parent=1 // loop_body
      %s25 = ssub.s32 %s20, 1
      %s26 = ssub.s32 %s20, 2
      %s27 = sadd.s32 %s20, 1
      %s28 = ssub.s32 %s20, %s27
      %p29 = scmp.eq.s32.totalorder %s28, 0
      %s31 = sadd.s32 %s30, 1
      %s32 = scalar_select %p29, %s30, %s31
      %p35 = pneg %p29
      %p36 = scmp.eq.s32.totalorder %s20, 2
      %p37 = por %p35, %p36
      %p38 = scmp.ne.s32.totalorder %s30, %s33
      %p39 = scmp.eq.s32.totalorder %s20, 0
      %p40 = por %p38, %p39
      %p41 = scmp.ne.s32.totalorder %s30, %s33
      %p42 = scmp.eq.s32.totalorder %s25, 2
      %p43 = por %p41, %p42
      %p44 = scmp.ne.s32.totalorder %s33, %s34
      %p45 = scmp.eq.s32.totalorder %s25, 0
      %p46 = por %p44, %p45
      %p47 = scmp.ne.s32.totalorder %s33, %s34
      %p48 = scmp.eq.s32.totalorder %s26, 2
      %p49 = por %p47, %p48
      %p51 = scmp.ne.s32.totalorder %s34, %s50
      %p52 = scmp.eq.s32.totalorder %s26, 0
      %p53 = por %p51, %p52
      %s55 = sadd.s32 %s54, 1
      %p58 = scmp.eq.s32.totalorder %s20, 2
      %p59 = scmp.ne.s32.totalorder %s54, %s56
      %p60 = scmp.eq.s32.totalorder %s20, 0
      %p61 = por %p59, %p60
      %p62 = scmp.ne.s32.totalorder %s54, %s56
      %p63 = scmp.eq.s32.totalorder %s25, 2
      %p64 = por %p62, %p63
      %p65 = scmp.ne.s32.totalorder %s56, %s57
      %p66 = scmp.eq.s32.totalorder %s25, 0
      %p67 = por %p65, %p66
      %p68 = scmp.ne.s32.totalorder %s56, %s57
      %p69 = scmp.eq.s32.totalorder %s26, 2
      %p70 = por %p68, %p69
      %p72 = scmp.ne.s32.totalorder %s57, %s71
      %p73 = scmp.eq.s32.totalorder %s26, 0
      %p74 = por %p72, %p73
      %s76 = sadd.s32 %s75, 1
      %p79 = scmp.eq.s32.totalorder %s20, 2
      %p80 = scmp.ne.s32.totalorder %s75, %s77
      %p81 = scmp.eq.s32.totalorder %s20, 0
      %p82 = por %p80, %p81
      %p83 = scmp.ne.s32.totalorder %s75, %s77
      %p84 = scmp.eq.s32.totalorder %s25, 2
      %p85 = por %p83, %p84
      %p86 = scmp.ne.s32.totalorder %s77, %s78
      %p87 = scmp.eq.s32.totalorder %s25, 0
      %p88 = por %p86, %p87
      %p89 = scmp.ne.s32.totalorder %s77, %s78
      %p90 = scmp.eq.s32.totalorder %s26, 2
      %p91 = por %p89, %p90
      %p93 = scmp.ne.s32.totalorder %s78, %s92
      %p94 = scmp.eq.s32.totalorder %s26, 0
      %p95 = por %p93, %p94
      %s97 = sadd.s32 %s96, 1
      %p100 = scmp.eq.s32.totalorder %s20, 2
      %p101 = scmp.ne.s32.totalorder %s96, %s98
      %p102 = scmp.eq.s32.totalorder %s20, 0
      %p103 = por %p101, %p102
      %p104 = scmp.ne.s32.totalorder %s96, %s98
      %p105 = scmp.eq.s32.totalorder %s25, 2
      %p106 = por %p104, %p105
      %p107 = scmp.ne.s32.totalorder %s98, %s99
      %p108 = scmp.eq.s32.totalorder %s25, 0
      %p109 = por %p107, %p108
      %p110 = scmp.ne.s32.totalorder %s98, %s99
      %p111 = scmp.eq.s32.totalorder %s26, 2
      %p112 = por %p110, %p111
      %p114 = scmp.ne.s32.totalorder %s99, %s113
      %p115 = scmp.eq.s32.totalorder %s26, 0
      %p116 = por %p114, %p115
      %s118 = sadd.s32 %s117, 1
      %p121 = scmp.eq.s32.totalorder %s20, 2
      %p122 = scmp.ne.s32.totalorder %s117, %s119
      %p123 = scmp.eq.s32.totalorder %s20, 0
      %p124 = por %p122, %p123
      %p125 = scmp.ne.s32.totalorder %s117, %s119
      %p126 = scmp.eq.s32.totalorder %s25, 2
      %p127 = por %p125, %p126
      %p128 = scmp.ne.s32.totalorder %s119, %s120
      %p129 = scmp.eq.s32.totalorder %s25, 0
      %p130 = por %p128, %p129
      %p131 = scmp.ne.s32.totalorder %s119, %s120
      %p132 = scmp.eq.s32.totalorder %s26, 2
      %p133 = por %p131, %p132
      %p135 = scmp.ne.s32.totalorder %s120, %s134
      %p136 = scmp.eq.s32.totalorder %s26, 0
      %p137 = por %p135, %p136
      %s139 = sadd.s32 %s138, 1
      %p142 = scmp.eq.s32.totalorder %s20, 2
      %p143 = scmp.ne.s32.totalorder %s138, %s140
      %p144 = scmp.eq.s32.totalorder %s20, 0
      %p145 = por %p143, %p144
      %p146 = scmp.ne.s32.totalorder %s138, %s140
      %p147 = scmp.eq.s32.totalorder %s25, 2
      %p148 = por %p146, %p147
      %p149 = scmp.ne.s32.totalorder %s140, %s141
      %p150 = scmp.eq.s32.totalorder %s25, 0
      %p151 = por %p149, %p150
      %p152 = scmp.ne.s32.totalorder %s140, %s141
      %p153 = scmp.eq.s32.totalorder %s26, 2
      %p154 = por %p152, %p153
      %p156 = scmp.ne.s32.totalorder %s141, %s155
      %p157 = scmp.eq.s32.totalorder %s26, 0
      %p158 = por %p156, %p157
      %s159 = ssub.s32 %s20, %s27
      %p160 = scmp.eq.s32.totalorder %s159, 0
      %s162 = sadd.s32 %s161, 1
      %s163 = scalar_select %p160, %s161, %s162
      %p166 = pneg %p160
      %p167 = scmp.eq.s32.totalorder %s20, 2
      %p168 = por %p166, %p167
      %p169 = scmp.ne.s32.totalorder %s161, %s164
      %p170 = scmp.eq.s32.totalorder %s20, 0
      %p171 = por %p169, %p170
      %p172 = scmp.ne.s32.totalorder %s161, %s164
      %p173 = scmp.eq.s32.totalorder %s25, 2
      %p174 = por %p172, %p173
      %p175 = scmp.ne.s32.totalorder %s164, %s165
      %p176 = scmp.eq.s32.totalorder %s25, 0
      %p177 = por %p175, %p176
      %p178 = scmp.ne.s32.totalorder %s164, %s165
      %p179 = scmp.eq.s32.totalorder %s26, 2
      %p180 = por %p178, %p179
      %p182 = scmp.ne.s32.totalorder %s165, %s181
      %p183 = scmp.eq.s32.totalorder %s26, 0
      %p184 = por %p182, %p183
      %p185 = scmp.le.s32.totalorder 1, %s20
      %p186 = scmp.lt.s32.totalorder %s20, 4
      %p187 = pnand %p185, %p186
      %p188 = pneg %p187
      // Predicated region
      $region9: #{tpu_custom_call.1} parent=5 // pred_check
        _
      $region10: #{tpu_custom_call.1} parent=5 // pred_check_branch
        %190 = sbr.rel (%p187) target = $region12
      $region11: #{tpu_custom_call.1} parent=5 // pred_region
        %s191 = ssub.s32 %s20, 1
        // Predicated region
        $region13: #{tpu_custom_call.1} parent=11 // pred_check
          %p192 = pneg %p67
        $region14: #{tpu_custom_call.1} parent=11 // pred_check_branch
          %194 = sbr.rel (%p192) target = $region16
        $region15: #{tpu_custom_call.1} parent=11 // pred_region
          %196 = vsyncadd [#allocation7], 0
          %s198 = sshll.u32 %s1, 4
          %s199 = int_to_ptr.hbm [resolvable:$true] %s198
          %s200 = sshll.u32 [#allocation6], 4
          %s201 = int_to_ptr.vmem [resolvable:$true] %s200
          %203 = dma.hbm_to_vmem [thread:$0]  %s199, 64, %s201, [#allocation7]
        $region16: #{tpu_custom_call.1} parent=11 // pred_fallthru
          _
        // Predicated region
        $region17: #{tpu_custom_call.1} parent=11 // pred_check
          %p204 = pneg %p88
        $region18: #{tpu_custom_call.1} parent=11 // pred_check_branch
          %206 = sbr.rel (%p204) target = $region20
        $region19: #{tpu_custom_call.1} parent=11 // pred_region
          %208 = vsyncadd [#allocation7], 0
          %s209 = sshll.u32 %s2, 4
          %s210 = int_to_ptr.hbm [resolvable:$true] %s209
          %s211 = sshll.u32 [#allocation8], 4
          %s212 = int_to_ptr.vmem [resolvable:$true] %s211
          %217 = dma.hbm_to_vmem [thread:$0]  %s210, 512, %s212, [#allocation7], 128, 128, 8
        $region20: #{tpu_custom_call.1} parent=11 // pred_fallthru
          _
        // Predicated region
        $region21: #{tpu_custom_call.1} parent=11 // pred_check
          %p218 = pneg %p109
        $region22: #{tpu_custom_call.1} parent=11 // pred_check_branch
          %220 = sbr.rel (%p218) target = $region24
        $region23: #{tpu_custom_call.1} parent=11 // pred_region
          %222 = vsyncadd [#allocation10], 0
          %s223 = sshll.u32 %s3, 4
          %s224 = int_to_ptr.hbm [resolvable:$true] %s223
          %s225 = sshll.u32 [#allocation9], 4
          %s226 = int_to_ptr.vmem [resolvable:$true] %s225
          %231 = dma.hbm_to_vmem [thread:$0]  %s224, 512, %s226, [#allocation10], 128, 128, 8
        $region24: #{tpu_custom_call.1} parent=11 // pred_fallthru
          _
        // Predicated region
        $region25: #{tpu_custom_call.1} parent=11 // pred_check
          %p232 = pneg %p130
        $region26: #{tpu_custom_call.1} parent=11 // pred_check_branch
          %234 = sbr.rel (%p232) target = $region28
        $region27: #{tpu_custom_call.1} parent=11 // pred_region
          _
        $region28: #{tpu_custom_call.1} parent=11 // pred_fallthru
          _
        // Predicated region
        $region29: #{tpu_custom_call.1} parent=11 // pred_check
          %p235 = pneg %p151
        $region30: #{tpu_custom_call.1} parent=11 // pred_check_branch
          %237 = sbr.rel (%p235) target = $region32
        $region31: #{tpu_custom_call.1} parent=11 // pred_region
          _
        $region32: #{tpu_custom_call.1} parent=11 // pred_fallthru
          _
      $region12: #{tpu_custom_call.1} parent=5 // pred_fallthru
        _
      %p238 = scmp.lt.s32.totalorder %s20, 3
      // Predicated region
      $region33: #{tpu_custom_call.1} parent=5 // pred_check
        %p239 = pneg %p238
      $region34: #{tpu_custom_call.1} parent=5 // pred_check_branch
        %241 = sbr.rel (%p239) target = $region36
      $region35: #{tpu_custom_call.1} parent=5 // pred_region
        // Predicated region
        $region37: #{tpu_custom_call.1} parent=35 // pred_check
          %p242 = pneg %p40
        $region38: #{tpu_custom_call.1} parent=35 // pred_check_branch
          %244 = sbr.rel (%p242) target = $region40
        $region39: #{tpu_custom_call.1} parent=35 // pred_region
          %s245 = sand.u32 %s30, 1
          %s246 = scalar_lea.sflag [#allocation4], %s245
          %s247 = sand.u32 %s30, 1
          %s248 = smul.addr %s247, 16
          %s249 = scalar_lea.vmem [#allocation3], %s248
          %s250 = smul.u32 4, %s20
          %252 = vsyncadd %s246, 0
          %s253 = smul.addr %s250, 4
          %s254 = scalar_lea.hbm %s0, %s253
          %s255 = sshll.u32 %s254, 4
          %s256 = int_to_ptr.hbm [resolvable:$true] %s255
          %s257 = sshll.u32 %s249, 4
          %s258 = int_to_ptr.vmem [resolvable:$true] %s257
          %263 = dma.hbm_to_vmem [thread:$0]  %s256, 256, %s258, %s246, 64, 64, 4
        $region40: #{tpu_custom_call.1} parent=35 // pred_fallthru
          _
      $region36: #{tpu_custom_call.1} parent=5 // pred_fallthru
        _
      %p264 = scmp.le.s32.totalorder 1, %s20
      %p265 = scmp.lt.s32.totalorder %s20, 4
      %p266 = pnand %p264, %p265
      %p267 = pneg %p266
      // Predicated region
      $region41: #{tpu_custom_call.1} parent=5 // pred_check
        _
      $region42: #{tpu_custom_call.1} parent=5 // pred_check_branch
        %269 = sbr.rel (%p266) target = $region44
      $region43: #{tpu_custom_call.1} parent=5 // pred_region
        %s270 = ssub.s32 %s20, 1
        %s271 = sand.u32 %s33, 1
        %s272 = scalar_lea.sflag [#allocation4], %s271
        %s273 = sand.u32 %s33, 1
        %s274 = smul.addr %s273, 16
        %s275 = scalar_lea.vmem [#allocation3], %s274
        // Predicated region
        $region45: #{tpu_custom_call.1} parent=43 // pred_check
          %p276 = pneg %p46
        $region46: #{tpu_custom_call.1} parent=43 // pred_check_branch
          %278 = sbr.rel (%p276) target = $region48
        $region47: #{tpu_custom_call.1} parent=43 // pred_region
          %280 = dma.done %s272, 256
        $region48: #{tpu_custom_call.1} parent=43 // pred_fallthru
          _
        // Predicated region
        $region49: #{tpu_custom_call.1} parent=43 // pred_check
          %p281 = pneg %p67
        $region50: #{tpu_custom_call.1} parent=43 // pred_check_branch
          %283 = sbr.rel (%p281) target = $region52
        $region51: #{tpu_custom_call.1} parent=43 // pred_region
          %285 = dma.done [#allocation7], 64
        $region52: #{tpu_custom_call.1} parent=43 // pred_fallthru
          _
        // Predicated region
        $region53: #{tpu_custom_call.1} parent=43 // pred_check
          %p286 = pneg %p88
        $region54: #{tpu_custom_call.1} parent=43 // pred_check_branch
          %288 = sbr.rel (%p286) target = $region56
        $region55: #{tpu_custom_call.1} parent=43 // pred_region
          %290 = dma.done [#allocation7], 512
        $region56: #{tpu_custom_call.1} parent=43 // pred_fallthru
          _
        // Predicated region
        $region57: #{tpu_custom_call.1} parent=43 // pred_check
          %p291 = pneg %p109
        $region58: #{tpu_custom_call.1} parent=43 // pred_check_branch
          %293 = sbr.rel (%p291) target = $region60
        $region59: #{tpu_custom_call.1} parent=43 // pred_region
          %295 = dma.done [#allocation10], 512
        $region60: #{tpu_custom_call.1} parent=43 // pred_fallthru
          _
        %s296 = sand.u32 %s33, 1
        %s297 = scalar_lea.sflag [#allocation4], %s296
        %s298 = sand.u32 %s33, 1
        %s299 = smul.addr %s298, 16
        %s300 = scalar_lea.vmem [#allocation3], %s299
        %p301 = pneg %p46
        %p302 = pneg %p43
        %p303 = pneg %p67
        %p304 = pneg %p64
        %p305 = pneg %p88
        %p306 = pneg %p85
        %p307 = pneg %p109
        %p308 = pneg %p106
        %p309 = pneg %p130
        %p310 = pneg %p127
        %p311 = pneg %p151
        %p312 = pneg %p148
        %p313 = pneg %p177
        %p314 = pneg %p174
        %s315 = sand.u32 %s164, 1
        %s316 = scalar_lea.sflag [#allocation5], %s315
        %s317 = sand.u32 %s164, 1
        %s318 = smul.addr %s317, 16
        %s319 = scalar_lea.vmem [#allocation11], %s318
        %s320 = smul.u32 4, %s25
        %s321 = smul.u32 4, %s25
        %p322 = scmp.eq.s32.totalorder %s25, 0
        // Predicated region
        $region61: #{tpu_custom_call.1} parent=43 // pred_check
          %p323 = pneg %p322
        $region62: #{tpu_custom_call.1} parent=43 // pred_check_branch
          %325 = sbr.rel (%p323) target = $region64
        $region63: #{tpu_custom_call.1} parent=43 // pred_region
          %v326 = vld [vmem:[#allocation6] sm:$0xf]
          %vm327 = vcmask 257024
          %328 = vst.msk [vmem:[#allocation2] sm:$0xf] %vm327, %v326
        $region64: #{tpu_custom_call.1} parent=43 // pred_fallthru
          _
        %v329 = vld [vmem:[#allocation8] sm:$0xff]
        %v330 = vld [vmem:[#allocation8 + $0x8] sm:$0xff]
        %v331 = vld [vmem:[#allocation8 + $0x10] sm:$0xff]
        %v332 = vld [vmem:[#allocation8 + $0x18] sm:$0xff]
        %v333 = vld [vmem:[#allocation9] sm:$0xff]
        %v334 = vld [vmem:[#allocation9 + $0x8] sm:$0xff]
        %v335 = vld [vmem:[#allocation9 + $0x10] sm:$0xff]
        %v336 = vld [vmem:[#allocation9 + $0x18] sm:$0xff]
        %v337 = vld [vmem:[%s4] sm:$0x1]
        %v338 = vld [vmem:[%s5] sm:$0x1]
        %v339 = vld [vmem:[%s275] sm:$0xf]
        %v340 = vld [vmem:[#allocation2] sm:$0xf]
        %v342 = vperm.slane %v337, 0
        %vm344 = vcmask 261120
        %v346 = vsel %vm344, %v339, 0
        %348 = vmatpush.msra.mxu0 0.0
        %349 = vmatpush.msra.mxu0 0.0
        %350 = vmatpush.msra.mxu0 0.0
        %351 = vmatpush.msra.mxu0 0.0
        %352 = vmatpush.msra.mxu0 0.0
        %353 = vmatpush.msra.mxu0 0.0
        %354 = vmatpush.msra.mxu0 0.0
        %355 = vmatpush.msra.mxu0 0.0
        %356 = vmatpush.msra.mxu0 0.0
        %357 = vmatpush.msra.mxu0 0.0
        %358 = vmatpush.msra.mxu0 0.0
        %359 = vmatpush.msra.mxu0 0.0
        %360 = vmatpush.msra.mxu0 %v332
        %361 = vmatpush.msra.mxu0 %v331
        %362 = vmatpush.msra.mxu0 %v330
        %363 = vmatpush.msra.mxu0 %v329
        %364 = vmatmul.f32.gmra.mxu0 %v346
        %v365 = vpop.f32.mrf.mxu0
        %v366 = vadd.f32 %v342, %v365
        %367 = vdwg.mxu0
        %v369 = vsel %vm344, %v340, 0
        %371 = vmatpush.msra.mxu0 0.0
        %372 = vmatpush.msra.mxu0 0.0
        %373 = vmatpush.msra.mxu0 0.0
        %374 = vmatpush.msra.mxu0 0.0
        %375 = vmatpush.msra.mxu0 0.0
        %376 = vmatpush.msra.mxu0 0.0
        %377 = vmatpush.msra.mxu0 0.0
        %378 = vmatpush.msra.mxu0 0.0
        %379 = vmatpush.msra.mxu0 0.0
        %380 = vmatpush.msra.mxu0 0.0
        %381 = vmatpush.msra.mxu0 0.0
        %382 = vmatpush.msra.mxu0 0.0
        %383 = vmatpush.msra.mxu0 %v336
        %384 = vmatpush.msra.mxu0 %v335
        %385 = vmatpush.msra.mxu0 %v334
        %386 = vmatpush.msra.mxu0 %v333
        %387 = vmatmul.f32.gmra.mxu0 %v369
        %v388 = vpop.f32.mrf.mxu0
        %v389 = vadd.f32 0.0, %v388
        %390 = vdwg.mxu0
        %v391 = vadd.f32 %v366, %v389
        %v392 = vxor.u32 %v391, 2147483648
        %v393 = vmul.f32 %v392, 1.442695
        %v394 = vpow.pop %v393
        %v395 = vadd.f32 %v394, 1.0
        %v396 = vrcp.pop %v395
        %v397 = vmul.f32 %v395, %v396
        %v398 = vsub.f32 1.0, %v397
        %v399 = vmul.f32 %v396, %v398
        %v400 = vadd.f32 %v396, %v399
        %vm401 = vweird.f32 %v395
        %vm402 = vweird.f32 %v396
        %vm403 = vmor %vm401, %vm402
        %v404 = vsel %vm403, %v396, %v400
        %v405 = vand.u32 2147483647, %v395
        %vm406 = vcmp.eq.f32.partialorder %v405, 8.507059e+37
        %v407 = vand.u32 %v395, 2147483648
        %v408 = vor.u32 1.1754944e-38, %v407
        %v409 = vsel %vm406, %v408, %v404
        %v410 = vmul.f32 1.0, %v409
        %v412 = vperm.slane %v338, 0
        %413 = vrot.lane.b32.xlu0 %v412, 64
        %v414 = vpop.permute.xlu0 %413
        %v416 = vadd.f32 %v389, %v414
        %418 = vrot.lane.b32.xlu0 %v416, 64
        %v419 = vpop.permute.xlu0 %418
        %v421 = vmul.f32 %v410, %v419
        %423 = vrot.lane.b32.xlu0 %v421, 64
        %v424 = vpop.permute.xlu0 %423
        %v426 = vadd.f32 %v366, %v424
        %v427 = vtanh.pop %v426
        %v428 = vsub.f32 1.0, %v410
        %430 = vrot.lane.b32.xlu0 %v427, 96
        %v431 = vpop.permute.xlu0 %430
        %v433 = vmul.f32 %v428, %v431
        %434 = vrot.lane.b32.xlu0 %v340, 32
        %v435 = vpop.permute.xlu0 %434
        %v437 = vmul.f32 %v410, %v435
        %v438 = vadd.f32 %v433, %v437
        %440 = vrot.lane.b32.xlu0 %v438, 96
        %v441 = vpop.permute.xlu0 %440
        %vm443 = vcmask 257024
        %444 = vst.msk [vmem:[#allocation2] sm:$0xf] %vm443, %v441
        %445 = vst.msk [vmem:[%s319] sm:$0xf] %vm443, %v441
        %s446 = scalar_lea.vmem %s275, 4 [#allocation3]
        %v447 = vld [vmem:[%s446] sm:$0xf]
        %v448 = vld [vmem:[#allocation2] sm:$0xf]
        %v450 = vsel %vm344, %v447, 0
        %452 = vmatpush.msra.mxu0 0.0
        %453 = vmatpush.msra.mxu0 0.0
        %454 = vmatpush.msra.mxu0 0.0
        %455 = vmatpush.msra.mxu0 0.0
        %456 = vmatpush.msra.mxu0 0.0
        %457 = vmatpush.msra.mxu0 0.0
        %458 = vmatpush.msra.mxu0 0.0
        %459 = vmatpush.msra.mxu0 0.0
        %460 = vmatpush.msra.mxu0 0.0
        %461 = vmatpush.msra.mxu0 0.0
        %462 = vmatpush.msra.mxu0 0.0
        %463 = vmatpush.msra.mxu0 0.0
        %464 = vmatpush.msra.mxu0 %v332
        %465 = vmatpush.msra.mxu0 %v331
        %466 = vmatpush.msra.mxu0 %v330
        %467 = vmatpush.msra.mxu0 %v329
        %468 = vmatmul.f32.gmra.mxu0 %v450
        %v469 = vpop.f32.mrf.mxu0
        %v470 = vadd.f32 %v342, %v469
        %471 = vdwg.mxu0
        %v473 = vsel %vm344, %v448, 0
        %475 = vmatpush.msra.mxu0 0.0
        %476 = vmatpush.msra.mxu0 0.0
        %477 = vmatpush.msra.mxu0 0.0
        %478 = vmatpush.msra.mxu0 0.0
        %479 = vmatpush.msra.mxu0 0.0
        %480 = vmatpush.msra.mxu0 0.0
        %481 = vmatpush.msra.mxu0 0.0
        %482 = vmatpush.msra.mxu0 0.0
        %483 = vmatpush.msra.mxu0 0.0
        %484 = vmatpush.msra.mxu0 0.0
        %485 = vmatpush.msra.mxu0 0.0
        %486 = vmatpush.msra.mxu0 0.0
        %487 = vmatpush.msra.mxu0 %v336
        %488 = vmatpush.msra.mxu0 %v335
        %489 = vmatpush.msra.mxu0 %v334
        %490 = vmatpush.msra.mxu0 %v333
        %491 = vmatmul.f32.gmra.mxu0 %v473
        %v492 = vpop.f32.mrf.mxu0
        %v493 = vadd.f32 0.0, %v492
        %494 = vdwg.mxu0
        %v495 = vadd.f32 %v470, %v493
        %v496 = vxor.u32 %v495, 2147483648
        %v497 = vmul.f32 %v496, 1.442695
        %v498 = vpow.pop %v497
        %v499 = vadd.f32 %v498, 1.0
        %v500 = vrcp.pop %v499
        %v501 = vmul.f32 %v499, %v500
        %v502 = vsub.f32 1.0, %v501
        %v503 = vmul.f32 %v500, %v502
        %v504 = vadd.f32 %v500, %v503
        %vm505 = vweird.f32 %v499
        %vm506 = vweird.f32 %v500
        %vm507 = vmor %vm505, %vm506
        %v508 = vsel %vm507, %v500, %v504
        %v509 = vand.u32 2147483647, %v499
        %vm510 = vcmp.eq.f32.partialorder %v509, 8.507059e+37
        %v511 = vand.u32 %v499, 2147483648
        %v512 = vor.u32 1.1754944e-38, %v511
        %v513 = vsel %vm510, %v512, %v508
        %v514 = vmul.f32 1.0, %v513
        %v515 = vadd.f32 %v493, %v414
        %517 = vrot.lane.b32.xlu0 %v515, 64
        %v518 = vpop.permute.xlu0 %517
        %v520 = vmul.f32 %v514, %v518
        %522 = vrot.lane.b32.xlu0 %v520, 64
        %v523 = vpop.permute.xlu0 %522
        %v525 = vadd.f32 %v470, %v523
        %v526 = vtanh.pop %v525
        %v527 = vsub.f32 1.0, %v514
        %529 = vrot.lane.b32.xlu0 %v526, 96
        %v530 = vpop.permute.xlu0 %529
        %v532 = vmul.f32 %v527, %v530
        %533 = vrot.lane.b32.xlu0 %v448, 32
        %v534 = vpop.permute.xlu0 %533
        %v536 = vmul.f32 %v514, %v534
        %v537 = vadd.f32 %v532, %v536
        %539 = vrot.lane.b32.xlu0 %v537, 96
        %v540 = vpop.permute.xlu0 %539
        %542 = vst.msk [vmem:[#allocation2] sm:$0xf] %vm443, %v540
        %s543 = scalar_lea.vmem %s319, 4 [#allocation11]
        %544 = vst.msk [vmem:[%s543] sm:$0xf] %vm443, %v540
        %s545 = scalar_lea.vmem %s275, 8 [#allocation3]
        %v546 = vld [vmem:[%s545] sm:$0xf]
        %v547 = vld [vmem:[#allocation2] sm:$0xf]
        %v549 = vsel %vm344, %v546, 0
        %551 = vmatpush.msra.mxu0 0.0
        %552 = vmatpush.msra.mxu0 0.0
        %553 = vmatpush.msra.mxu0 0.0
        %554 = vmatpush.msra.mxu0 0.0
        %555 = vmatpush.msra.mxu0 0.0
        %556 = vmatpush.msra.mxu0 0.0
        %557 = vmatpush.msra.mxu0 0.0
        %558 = vmatpush.msra.mxu0 0.0
        %559 = vmatpush.msra.mxu0 0.0
        %560 = vmatpush.msra.mxu0 0.0
        %561 = vmatpush.msra.mxu0 0.0
        %562 = vmatpush.msra.mxu0 0.0
        %563 = vmatpush.msra.mxu0 %v332
        %564 = vmatpush.msra.mxu0 %v331
        %565 = vmatpush.msra.mxu0 %v330
        %566 = vmatpush.msra.mxu0 %v329
        %567 = vmatmul.f32.gmra.mxu0 %v549
        %v568 = vpop.f32.mrf.mxu0
        %v569 = vadd.f32 %v342, %v568
        %570 = vdwg.mxu0
        %v572 = vsel %vm344, %v547, 0
        %574 = vmatpush.msra.mxu0 0.0
        %575 = vmatpush.msra.mxu0 0.0
        %576 = vmatpush.msra.mxu0 0.0
        %577 = vmatpush.msra.mxu0 0.0
        %578 = vmatpush.msra.mxu0 0.0
        %579 = vmatpush.msra.mxu0 0.0
        %580 = vmatpush.msra.mxu0 0.0
        %581 = vmatpush.msra.mxu0 0.0
        %582 = vmatpush.msra.mxu0 0.0
        %583 = vmatpush.msra.mxu0 0.0
        %584 = vmatpush.msra.mxu0 0.0
        %585 = vmatpush.msra.mxu0 0.0
        %586 = vmatpush.msra.mxu0 %v336
        %587 = vmatpush.msra.mxu0 %v335
        %588 = vmatpush.msra.mxu0 %v334
        %589 = vmatpush.msra.mxu0 %v333
        %590 = vmatmul.f32.gmra.mxu0 %v572
        %v591 = vpop.f32.mrf.mxu0
        %v592 = vadd.f32 0.0, %v591
        %593 = vdwg.mxu0
        %v594 = vadd.f32 %v569, %v592
        %v595 = vxor.u32 %v594, 2147483648
        %v596 = vmul.f32 %v595, 1.442695
        %v597 = vpow.pop %v596
        %v598 = vadd.f32 %v597, 1.0
        %v599 = vrcp.pop %v598
        %v600 = vmul.f32 %v598, %v599
        %v601 = vsub.f32 1.0, %v600
        %v602 = vmul.f32 %v599, %v601
        %v603 = vadd.f32 %v599, %v602
        %vm604 = vweird.f32 %v598
        %vm605 = vweird.f32 %v599
        %vm606 = vmor %vm604, %vm605
        %v607 = vsel %vm606, %v599, %v603
        %v608 = vand.u32 2147483647, %v598
        %vm609 = vcmp.eq.f32.partialorder %v608, 8.507059e+37
        %v610 = vand.u32 %v598, 2147483648
        %v611 = vor.u32 1.1754944e-38, %v610
        %v612 = vsel %vm609, %v611, %v607
        %v613 = vmul.f32 1.0, %v612
        %v614 = vadd.f32 %v592, %v414
        %616 = vrot.lane.b32.xlu0 %v614, 64
        %v617 = vpop.permute.xlu0 %616
        %v619 = vmul.f32 %v613, %v617
        %621 = vrot.lane.b32.xlu0 %v619, 64
        %v622 = vpop.permute.xlu0 %621
        %v624 = vadd.f32 %v569, %v622
        %v625 = vtanh.pop %v624
        %v626 = vsub.f32 1.0, %v613
        %628 = vrot.lane.b32.xlu0 %v625, 96
        %v629 = vpop.permute.xlu0 %628
        %v631 = vmul.f32 %v626, %v629
        %632 = vrot.lane.b32.xlu0 %v547, 32
        %v633 = vpop.permute.xlu0 %632
        %v635 = vmul.f32 %v613, %v633
        %v636 = vadd.f32 %v631, %v635
        %638 = vrot.lane.b32.xlu0 %v636, 96
        %v639 = vpop.permute.xlu0 %638
        %641 = vst.msk [vmem:[#allocation2] sm:$0xf] %vm443, %v639
        %s642 = scalar_lea.vmem %s319, 8 [#allocation11]
        %643 = vst.msk [vmem:[%s642] sm:$0xf] %vm443, %v639
        %s644 = scalar_lea.vmem %s275, 12 [#allocation3]
        %v645 = vld [vmem:[%s644] sm:$0xf]
        %v646 = vld [vmem:[#allocation2] sm:$0xf]
        %v648 = vsel %vm344, %v645, 0
        %650 = vmatpush.msra.mxu0 0.0
        %651 = vmatpush.msra.mxu0 0.0
        %652 = vmatpush.msra.mxu0 0.0
        %653 = vmatpush.msra.mxu0 0.0
        %654 = vmatpush.msra.mxu0 0.0
        %655 = vmatpush.msra.mxu0 0.0
        %656 = vmatpush.msra.mxu0 0.0
        %657 = vmatpush.msra.mxu0 0.0
        %658 = vmatpush.msra.mxu0 0.0
        %659 = vmatpush.msra.mxu0 0.0
        %660 = vmatpush.msra.mxu0 0.0
        %661 = vmatpush.msra.mxu0 0.0
        %662 = vmatpush.msra.mxu0 %v332
        %663 = vmatpush.msra.mxu0 %v331
        %664 = vmatpush.msra.mxu0 %v330
        %665 = vmatpush.msra.mxu0 %v329
        %666 = vmatmul.f32.gmra.mxu0 %v648
        %v667 = vpop.f32.mrf.mxu0
        %v668 = vadd.f32 %v342, %v667
        %669 = vdwg.mxu0
        %v671 = vsel %vm344, %v646, 0
        %673 = vmatpush.msra.mxu0 0.0
        %674 = vmatpush.msra.mxu0 0.0
        %675 = vmatpush.msra.mxu0 0.0
        %676 = vmatpush.msra.mxu0 0.0
        %677 = vmatpush.msra.mxu0 0.0
        %678 = vmatpush.msra.mxu0 0.0
        %679 = vmatpush.msra.mxu0 0.0
        %680 = vmatpush.msra.mxu0 0.0
        %681 = vmatpush.msra.mxu0 0.0
        %682 = vmatpush.msra.mxu0 0.0
        %683 = vmatpush.msra.mxu0 0.0
        %684 = vmatpush.msra.mxu0 0.0
        %685 = vmatpush.msra.mxu0 %v336
        %686 = vmatpush.msra.mxu0 %v335
        %687 = vmatpush.msra.mxu0 %v334
        %688 = vmatpush.msra.mxu0 %v333
        %689 = vmatmul.f32.gmra.mxu0 %v671
        %v690 = vpop.f32.mrf.mxu0
        %v691 = vadd.f32 0.0, %v690
        %692 = vdwg.mxu0
        %v693 = vadd.f32 %v668, %v691
        %v694 = vxor.u32 %v693, 2147483648
        %v695 = vmul.f32 %v694, 1.442695
        %v696 = vpow.pop %v695
        %v697 = vadd.f32 %v696, 1.0
        %v698 = vrcp.pop %v697
        %v699 = vmul.f32 %v697, %v698
        %v700 = vsub.f32 1.0, %v699
        %v701 = vmul.f32 %v698, %v700
        %v702 = vadd.f32 %v698, %v701
        %vm703 = vweird.f32 %v697
        %vm704 = vweird.f32 %v698
        %vm705 = vmor %vm703, %vm704
        %v706 = vsel %vm705, %v698, %v702
        %v707 = vand.u32 2147483647, %v697
        %vm708 = vcmp.eq.f32.partialorder %v707, 8.507059e+37
        %v709 = vand.u32 %v697, 2147483648
        %v710 = vor.u32 1.1754944e-38, %v709
        %v711 = vsel %vm708, %v710, %v706
        %v712 = vmul.f32 1.0, %v711
        %v713 = vadd.f32 %v691, %v414
        %715 = vrot.lane.b32.xlu0 %v713, 64
        %v716 = vpop.permute.xlu0 %715
        %v718 = vmul.f32 %v712, %v716
        %720 = vrot.lane.b32.xlu0 %v718, 64
        %v721 = vpop.permute.xlu0 %720
        %v723 = vadd.f32 %v668, %v721
        %v724 = vtanh.pop %v723
        %v725 = vsub.f32 1.0, %v712
        %727 = vrot.lane.b32.xlu0 %v724, 96
        %v728 = vpop.permute.xlu0 %727
        %v730 = vmul.f32 %v725, %v728
        %731 = vrot.lane.b32.xlu0 %v646, 32
        %v732 = vpop.permute.xlu0 %731
        %v734 = vmul.f32 %v712, %v732
        %v735 = vadd.f32 %v730, %v734
        %737 = vrot.lane.b32.xlu0 %v735, 96
        %v738 = vpop.permute.xlu0 %737
        %740 = vst.msk [vmem:[#allocation2] sm:$0xf] %vm443, %v738
        %s741 = scalar_lea.vmem %s319, 12 [#allocation11]
        %742 = vst.msk [vmem:[%s741] sm:$0xf] %vm443, %v738
        %s743 = sand.u32 %s164, 1
        %s744 = scalar_lea.sflag [#allocation5], %s743
        %s745 = sand.u32 %s164, 1
        %s746 = smul.addr %s745, 16
        %s747 = scalar_lea.vmem [#allocation11], %s746
        // Predicated region
        $region65: #{tpu_custom_call.1} parent=43 // pred_check
          %p748 = pneg %p174
        $region66: #{tpu_custom_call.1} parent=43 // pred_check_branch
          %750 = sbr.rel (%p748) target = $region68
        $region67: #{tpu_custom_call.1} parent=43 // pred_region
          %s751 = smul.u32 4, %s25
          %753 = vsyncadd %s744, 0
          %s754 = smul.addr %s751, 4
          %s755 = scalar_lea.hbm %s6, %s754
          %s756 = sshll.u32 %s747, 4
          %s757 = int_to_ptr.vmem [resolvable:$true] %s756
          %s758 = sshll.u32 %s755, 4
          %s759 = int_to_ptr.hbm [resolvable:$true] %s758
          %764 = dma.vmem_to_hbm [thread:$0]  %s757, 256, %s759, %s744, 64, 64, 4
        $region68: #{tpu_custom_call.1} parent=43 // pred_fallthru
          _
      $region44: #{tpu_custom_call.1} parent=5 // pred_fallthru
        _
      %p765 = scmp.le.s32.totalorder 2, %s20
      // Predicated region
      $region69: #{tpu_custom_call.1} parent=5 // pred_check
        %p766 = pneg %p765
      $region70: #{tpu_custom_call.1} parent=5 // pred_check_branch
        %768 = sbr.rel (%p766) target = $region72
      $region71: #{tpu_custom_call.1} parent=5 // pred_region
        %s769 = ssub.s32 %s20, 2
        // Predicated region
        $region73: #{tpu_custom_call.1} parent=71 // pred_check
          %p770 = pneg %p180
        $region74: #{tpu_custom_call.1} parent=71 // pred_check_branch
          %772 = sbr.rel (%p770) target = $region76
        $region75: #{tpu_custom_call.1} parent=71 // pred_region
          %s773 = sand.u32 %s165, 1
          %s774 = scalar_lea.sflag [#allocation5], %s773
          %s775 = sand.u32 %s165, 1
          %s776 = smul.addr %s775, 16
          %s777 = scalar_lea.vmem [#allocation11], %s776
          %779 = dma.done %s774, 256
        $region76: #{tpu_custom_call.1} parent=71 // pred_fallthru
          _
      $region72: #{tpu_custom_call.1} parent=5 // pred_fallthru
        _
    $region6: #{tpu_custom_call.1} parent=1 // loop_footer
      %s24 = sadd.s32 1, %s20
    $region7: #{tpu_custom_call.1} parent=1 // loop_footer_branch
      %19 = sbr.rel target = $region3
    $region8: #{tpu_custom_call.1} parent=1 // loop_exit
      _
    %780 = vsyncpa [#allocation4], 1
    %s781 = scalar_lea.sflag [#allocation4], 1
    %782 = vsyncpa %s781, 1
    %783 = vsyncpa [#allocation7], 1
    %784 = vsyncpa [#allocation10], 1
    %785 = vsyncpa [#allocation5], 1
    %s786 = scalar_lea.sflag [#allocation5], 1
    %787 = vsyncpa %s786, 1

</llo_original>
